<compile_context>
chip_gen: v6e
topology: v6e:2x2x1
jax: 0.10.0
libtpu: 0.0.40
codegen_flags: <defaults>
</compile_context>

<pallas_src>
import functools

import jax
import jax.numpy as jnp
from jax import lax
from jax.experimental import pallas as pl
from jax.experimental.pallas import tpu as pltpu


def _center_loss_kernel(tgt_sm, tgt_ref, feat_ref, cent_ref, part_ref, *,
                        batch, gather):
    """One grid step: partial sum of squared errors for one batch tile."""
    i = pl.program_id(0)
    tb, d = feat_ref.shape
    num_classes = cent_ref.shape[0]

    f = feat_ref[...].astype(jnp.float32)                       # (tb, D)

    def finish(c):
        # Row-wise L2 normalize: rsqrt (EUP slot) + multiply (VPU), no divide.
        # Zero-norm rows give NaN/Inf, matching `features / norm` in PyTorch.
        inv_norm = lax.rsqrt(jnp.sum(f * f, axis=1, keepdims=True))
        diff = f * inv_norm - c
        sq = diff * diff
        # Mask batch-padding rows (also neutralizes their rsqrt(0) NaNs).
        row = i * tb + lax.broadcasted_iota(jnp.int32, sq.shape, 0)
        sq = jnp.where(row < batch, sq, 0.0)
        # Single cross-lane reduce (XLU, otherwise idle) -> lane-dense block.
        part_ref[...] = jnp.full(part_ref.shape, jnp.sum(sq), dtype=jnp.float32)

    if gather == "take":
        # Direct VMEM row gather of the centers table (no one-hot, no MXU).
        idx = tgt_ref[...][:, 0]                                 # (tb,) int32
        c = jnp.take(cent_ref[...].astype(jnp.float32), idx, axis=0, mode="clip")
        finish(c)
    else:
        # Portable fallback: per-row dynamic-index loads from the VMEM-resident
        # centers, indices read as scalars from the scalar-prefetched SMEM
        # targets, staged into a scoped VMEM buffer.
        def scoped(gbuf):
            def body(j, carry):
                t = jnp.clip(tgt_sm[i * tb + j], 0, num_classes - 1)
                gbuf[pl.ds(j, 1), :] = cent_ref[pl.ds(t, 1), :].astype(jnp.float32)
                return carry

            lax.fori_loop(0, tb, body, 0)
            finish(gbuf[...])

        pl.run_scoped(scoped, pltpu.VMEM((tb, d), jnp.float32))


def _pick_batch_tile(B, D, C, feat_bytes, *, vmem_budget=32 << 20, max_rows=4096):
    """Largest multiple-of-8 row tile whose real VMEM footprint fits the budget.

    Accounts for: centers block (conservatively double-buffered), the features
    double-buffer, the lane-padded (tb, 1) targets blocks, and a (tb, D) f32
    staging/temporary allowance.
    """
    d_pad = ((D + 127) // 128) * 128
    c_pad = ((C + 7) // 8) * 8
    fixed = 2 * c_pad * d_pad * 4                       # centers table
    per_row = 2 * d_pad * feat_bytes + 2 * 128 * 4 + d_pad * 4
    avail = max(vmem_budget - fixed, 8 * per_row)
    cap = max(8, min(max_rows, int(avail // per_row) // 8 * 8))
    b_pad8 = ((B + 7) // 8) * 8
    return int(min(cap, b_pad8))


def center_loss(features, centers, targets, *, batch_tile=None, gather="take"):
    """Pallas CenterLoss forward.

    features: (B, D) float (f32 or bf16), centers: (C, D) float, targets: (B,) int.
    gather: "take" (in-kernel dynamic gather, default) or "loop" (per-row
    dynamic-index loads; portable fallback).
    """
    B, D = features.shape
    C, D2 = centers.shape
    if D != D2:
        raise ValueError("centers feature_dim must match features feature_dim")

    feat_bytes = jnp.dtype(features.dtype).itemsize
    if batch_tile is None:
        batch_tile = _pick_batch_tile(B, D, C, feat_bytes)
    batch_tile = max(8, ((int(batch_tile) + 7) // 8) * 8)

    num_tiles = pl.cdiv(B, batch_tile)
    b_pad = num_tiles * batch_tile

    feats = features
    tgts = targets.astype(jnp.int32)
    if b_pad != B:
        feats = jnp.pad(feats, ((0, b_pad - B), (0, 0)))
        tgts = jnp.pad(tgts, ((0, b_pad - B),))
    tgt2d = tgts.reshape(b_pad, 1)

    # Explicit VMEM budget for the compiler (headroom for casts/temporaries),
    # capped at 64 MiB so it is safe on v7x and generous on v5e/v6e.
    d_pad = ((D + 127) // 128) * 128
    c_pad = ((C + 7) // 8) * 8
    vmem_est = (2 * c_pad * d_pad * 4
                + 2 * batch_tile * d_pad * feat_bytes
                + 2 * batch_tile * 128 * 4
                + batch_tile * d_pad * 4
                + 2 * 8 * 128 * 4)
    vmem_limit = int(min(max(2 * vmem_est, 32 << 20), 64 << 20))

    kernel = functools.partial(_center_loss_kernel, batch=B, gather=gather)

    partials = pl.pallas_call(
        kernel,
        out_shape=jax.ShapeDtypeStruct((1, num_tiles * 128), jnp.float32),
        grid_spec=pltpu.PrefetchScalarGridSpec(
            num_scalar_prefetch=1,                     # targets -> SMEM
            grid=(num_tiles,),
            in_specs=[
                pl.BlockSpec((batch_tile, 1), lambda i, tgt_sm: (i, 0)),  # targets (VMEM col)
                pl.BlockSpec((batch_tile, D), lambda i, tgt_sm: (i, 0)),  # features stream
                pl.BlockSpec((C, D), lambda i, tgt_sm: (0, 0)),           # centers (VMEM-resident)
            ],
            out_specs=pl.BlockSpec((1, 128), lambda i, tgt_sm: (0, i)),   # lane-dense partials
        ),
        compiler_params=pltpu.CompilerParams(
            dimension_semantics=("parallel",),          # no carried state -> both TCs on v7x
            vmem_limit_bytes=vmem_limit,
        ),
    )(tgts, tgt2d, feats, centers)

    per_tile = partials.reshape(num_tiles, 128)[:, 0]
    return jnp.sum(per_tile) / jnp.float32(B * D)


def center_loss_ref(features, centers, targets):
    target_centers = centers[targets]
    norm = jnp.linalg.norm(features, axis=1, keepdims=True)
    fn = features / norm
    return jnp.mean((fn - target_centers) ** 2)


if __name__ == "__main__":
    num_classes = 10
    feature_dim = 32
    batch = 16

    key = jax.random.PRNGKey(0)
    k_cent, k_feat, k_tgt = jax.random.split(key, 3)

    # Deterministic init mirroring torch.rand(num_classes, feature_dim).
    centers = jax.random.uniform(k_cent, (num_classes, feature_dim), dtype=jnp.float32)
    features = jax.random.normal(k_feat, (batch, feature_dim), dtype=jnp.float32)
    targets = jax.random.randint(k_tgt, (batch,), 0, num_classes, dtype=jnp.int32)

    try:
        loss = jax.block_until_ready(center_loss(features, centers, targets))
    except Exception:
        # Portability fallback: Mosaic builds without the in-kernel gather
        # lowering take the per-row dynamic-index-load path instead.
        loss = jax.block_until_ready(
            center_loss(features, centers, targets, gather="loop"))

    ref = jax.block_until_ready(center_loss_ref(features, centers, targets))

    assert jnp.allclose(loss, ref, rtol=1e-4, atol=1e-6), (loss, ref)
    print("KERNEL_OK")
</pallas_src>

<mosaic_0001>
module attributes {stable_mosaic.version = 11 : i64} {
  func.func @_center_loss_kernel(%arg0: i32, %arg1: memref<16xi32, #tpu.memory_space<smem>>, %arg2: memref<16x1xi32, #tpu.memory_space<vmem>>, %arg3: memref<16x32xf32, #tpu.memory_space<vmem>>, %arg4: memref<10x32xf32, #tpu.memory_space<vmem>>, %arg5: memref<1x128xf32, #tpu.memory_space<vmem>>) attributes {dimension_semantics = [#tpu.dimension_semantics<parallel>], iteration_bounds = array<i64: 1>, scalar_prefetch = 1 : i64, scratch_operands = 0 : i64, tpu.core_type = #tpu.core_type<tc>, window_params = [{transform_indices = @transform_0, window_bounds = array<i64: 16, 1>}, {transform_indices = @transform_1, window_bounds = array<i64: 16, 32>}, {pipeline_mode = #tpu.pipeline_mode<synchronous>, transform_indices = @transform_2, window_bounds = array<i64: 10, 32>}, {transform_indices = @transform_3, window_bounds = array<i64: 1, 128>}]} {
    %c0 = arith.constant 0 : index
    %c0_0 = arith.constant 0 : index
    %0 = vector.load %arg3[%c0, %c0_0] : memref<16x32xf32, #tpu.memory_space<vmem>>, vector<16x32xf32>
    "tpu.region"() ({
      %alloca = memref.alloca() : memref<16x32xf32, #tpu.memory_space<vmem>>
      %c0_i32 = arith.constant 0 : i32
      %c0_i32_1 = arith.constant 0 : i32
      %c16_i32 = arith.constant 16 : i32
      %1 = arith.addi %c0_i32_1, %c16_i32 : i32
      %c1_i32 = arith.constant 1 : i32
      scf.for %arg6 = %c0_i32_1 to %1 step %c1_i32  : i32 {
        %c16_i32_11 = arith.constant 16 : i32
        %25 = arith.muli %arg0, %c16_i32_11 : i32
        %26 = arith.addi %25, %arg6 : i32
        %27 = arith.index_cast %26 : i32 to index
        %28 = memref.load %arg1[%27] : memref<16xi32, #tpu.memory_space<smem>>
        %c0_i32_12 = arith.constant 0 : i32
        %c9_i32 = arith.constant 9 : i32
        %29 = arith.maxsi %c0_i32_12, %28 : i32
        %30 = arith.minsi %c9_i32, %29 : i32
        %31 = arith.index_cast %30 : i32 to index
        %c0_13 = arith.constant 0 : index
        %32 = vector.load %arg4[%31, %c0_13] : memref<10x32xf32, #tpu.memory_space<vmem>>, vector<1x32xf32>
        %33 = arith.index_cast %arg6 : i32 to index
        %c0_14 = arith.constant 0 : index
        %34 = vector.load %alloca[%33, %c0_14] : memref<16x32xf32, #tpu.memory_space<vmem>>, vector<1x32xf32>
        tpu.vector_store %alloca[%33, %c0_14], %32 {strides = array<i32>} : memref<16x32xf32, #tpu.memory_space<vmem>>, vector<1x32xf32>,
      }
      %c16_i32_2 = arith.constant 16 : i32
      %c0_3 = arith.constant 0 : index
      %c0_4 = arith.constant 0 : index
      %2 = vector.load %alloca[%c0_3, %c0_4] : memref<16x32xf32, #tpu.memory_space<vmem>>, vector<16x32xf32>
      %3 = arith.mulf %0, %0 : vector<16x32xf32>
      %cst = arith.constant dense<0.000000e+00> : vector<16xf32>
      %4 = vector.multi_reduction <add>, %3, %cst [1] : vector<16x32xf32> to vector<16xf32>
      %5 = vector.shape_cast %4 : vector<16xf32> to vector<16x1xf32>
      %6 = math.rsqrt %5 : vector<16x1xf32>
      %7 = vector.broadcast %6 : vector<16x1xf32> to vector<16x32xf32>
      %8 = arith.mulf %0, %7 : vector<16x32xf32>
      %9 = arith.subf %8, %2 : vector<16x32xf32>
      %10 = arith.mulf %9, %9 : vector<16x32xf32>
      %c16_i32_5 = arith.constant 16 : i32
      %11 = arith.muli %arg0, %c16_i32_5 : i32
      %12 = tpu.iota {dimensions = array<i32: 0>} : vector<16x32xi32>
      %13 = vector.broadcast %11 : i32 to vector<16x32xi32>
      %14 = arith.addi %13, %12 : vector<16x32xi32>
      %c16_i32_6 = arith.constant 16 : i32
      %15 = vector.broadcast %c16_i32_6 : i32 to vector<16x32xi32>
      %16 = arith.cmpi slt, %14, %15 : vector<16x32xi32>
      %cst_7 = arith.constant 0.000000e+00 : f32
      %17 = vector.broadcast %cst_7 : f32 to vector<16x32xf32>
      %18 = arith.select %16, %10, %17 : vector<16x32xi1>, vector<16x32xf32>
      %19 = vector.shape_cast %18 : vector<16x32xf32> to vector<1x16x32xf32>
      %cst_8 = arith.constant dense<0.000000e+00> : vector<1xf32>
      %20 = vector.multi_reduction <add>, %19, %cst_8 [1, 2] : vector<1x16x32xf32> to vector<1xf32>
      %21 = vector.shape_cast %20 : vector<1xf32> to vector<1x1x1xf32>
      %22 = vector.extract %21[0, 0, 0] : f32 from vector<1x1x1xf32>
      %23 = vector.broadcast %22 : f32 to vector<1x128xf32>
      %c0_9 = arith.constant 0 : index
      %c0_10 = arith.constant 0 : index
      %24 = vector.load %arg5[%c0_9, %c0_10] : memref<1x128xf32, #tpu.memory_space<vmem>>, vector<1x128xf32>
      tpu.vector_store %arg5[%c0_9, %c0_10], %23 {strides = array<i32>} : memref<1x128xf32, #tpu.memory_space<vmem>>, vector<1x128xf32>,
      tpu.yield
    }) : () -> ()
    return
  }
  func.func @transform_0(%arg0: i32, %arg1: memref<16xi32, #tpu.memory_space<smem>>) -> (i32, i32) {
    %c0_i32 = arith.constant 0 : i32
    %c0_i32_0 = arith.constant 0 : i32
    return %arg0, %c0_i32 : i32, i32
  }
  func.func @transform_1(%arg0: i32, %arg1: memref<16xi32, #tpu.memory_space<smem>>) -> (i32, i32) {
    %c0_i32 = arith.constant 0 : i32
    %c0_i32_0 = arith.constant 0 : i32
    return %arg0, %c0_i32 : i32, i32
  }
  func.func @transform_2(%arg0: i32, %arg1: memref<16xi32, #tpu.memory_space<smem>>) -> (i32, i32) {
    %c0_i32 = arith.constant 0 : i32
    %c0_i32_0 = arith.constant 0 : i32
    %c0_i32_1 = arith.constant 0 : i32
    return %c0_i32, %c0_i32_0 : i32, i32
  }
  func.func @transform_3(%arg0: i32, %arg1: memref<16xi32, #tpu.memory_space<smem>>) -> (i32, i32) {
    %c0_i32 = arith.constant 0 : i32
    %c0_i32_0 = arith.constant 0 : i32
    return %c0_i32, %arg0 : i32, i32
  }
}

</mosaic_0001>

<llo_original>
// kernel: tpu_custom_call.1
$region0: #{tpu_custom_call.1}
  #allocation0 [shape = 'u32[]', space=smem, size = 0x4, offset = 0x4, fixed_abs, tag = 'smem constant byte address 0x4 - core index']
  #allocation1 [shape = 'u32[144,128]{1,0:T(1,128)}', space=vmem, size = 0x12000, scoped, tag = 'internal scratch']
  #allocation2 [shape = 's32[1]{0}', space=sflag, size = 0x4, scoped, tag = 'scoped memory for tpu_custom_call.1']
  #allocation3 [shape = 'u8[512]{0}', space=smem, size = 0x200, scoped, tag = 'prefetched SMEM operand 0']
  %s0 = inlined_call_operand.vmem [shape: s32[16], index: 0, kind: input, shape index: {}]
  %s1 = inlined_call_operand.vmem [shape: s32[16,1], index: 1, kind: input, shape index: {}]
  %s2 = inlined_call_operand.vmem [shape: f32[16,32], index: 2, kind: input, shape index: {}]
  %s3 = inlined_call_operand.hbm [shape: f32[10,32], index: 3, kind: input, shape index: {}]
  %s4 = inlined_call_operand.hbm [shape: f32[1,128], index: 4, kind: output, shape index: {}]
  %s5 = sld [smem:[#allocation0]]
  $region34: #{tpu_custom_call.1} parent=0
    _
  %s7 = ssub.s32 1, %s5
  %s8 = scalar_select 0, %s7, %s5
  %s9 = sshll.u32 %s0, 4
  %s10 = int_to_ptr.vmem [resolvable:$true] %s9
  %12 = dma.vmem_to_smem %s10, 16, [#allocation3], [#allocation2]
  %13 = dma.done [#allocation2], 16
  %14 = sfence
  $region1: #{tpu_custom_call.1} parent=0
    #allocation4 [shape = 'u8[8192]{0}', space=vmem, size = 0x2000, scoped, tag = 'input window, operand 3, single buffered']
    #allocation5 [shape = 's32[1]{0}', space=sflag, size = 0x4, scoped, tag = 'scoped memory for tpu_custom_call.1']
    #allocation6 [shape = 's32[1]{0}', space=sflag, size = 0x4, scoped, tag = 'scoped memory for tpu_custom_call.1']
    #allocation7 [shape = 'u8[512]{0}', space=vmem, size = 0x400, scoped, tag = 'output window, operand 0, single buffered']
    %15 = vsyncpa [#allocation5], 0
    %16 = vsyncpa [#allocation6], 0
    // Predicated region
    $region2: #{tpu_custom_call.1} parent=1 // pred_check
      _
    $region3: #{tpu_custom_call.1} parent=1 // pred_check_branch
      %18 = sbr.rel (0) target = $region5
    $region4: #{tpu_custom_call.1} parent=1 // pred_region
      _
    $region5: #{tpu_custom_call.1} parent=1 // pred_fallthru
      _
    // Predicated region
    $region6: #{tpu_custom_call.1} parent=1 // pred_check
      _
    $region7: #{tpu_custom_call.1} parent=1 // pred_check_branch
      %20 = sbr.rel (0) target = $region9
    $region8: #{tpu_custom_call.1} parent=1 // pred_region
      _
    $region9: #{tpu_custom_call.1} parent=1 // pred_fallthru
      _
    // Predicated region
    $region10: #{tpu_custom_call.1} parent=1 // pred_check
      _
    $region11: #{tpu_custom_call.1} parent=1 // pred_check_branch
      %22 = sbr.rel (0) target = $region13
    $region12: #{tpu_custom_call.1} parent=1 // pred_region
      %s24 = ssub.s32 256, 256
      %25 = vsyncadd [#allocation5], %s24
      %s26 = sshll.u32 [#allocation4], 4
      %s27 = int_to_ptr.vmem [resolvable:$true] %s26
      %32 = dma.hbm_to_vmem [thread:$0]  %s3, 256, %s27, [#allocation5], 128, 128, 8
    $region13: #{tpu_custom_call.1} parent=1 // pred_fallthru
      _
    // Predicated region
    $region14: #{tpu_custom_call.1} parent=1 // pred_check
      _
    $region15: #{tpu_custom_call.1} parent=1 // pred_check_branch
      %34 = sbr.rel (0) target = $region17
    $region16: #{tpu_custom_call.1} parent=1 // pred_region
      %35 = dma.done [#allocation5], 256
    $region17: #{tpu_custom_call.1} parent=1 // pred_fallthru
      _
    %v36 = vld [vmem:[%s2] sm:$0xff]
    %v37 = vld [vmem:[%s2 + $0x8] sm:$0xff]
    $region18: #{tpu_custom_call.1} parent=1
      #allocation8 [shape = 'u8[8192]{0}', space=vmem, size = 0x2000, scoped, tag = 'scoped memory for tpu_custom_call.1']
      loop: start=0, step=1, limit=16
      $region19: #{tpu_custom_call.1} parent=18 // loop_pre_header
        _
      $region20: #{tpu_custom_call.1} parent=18 // loop_header
        %s39 = sphi 0, %s43
        %p40 = scmp.ge.s32.totalorder %s39, 16
      $region21: #{tpu_custom_call.1} parent=18 // loop_header_branch
        %42 = sbr.rel (%p40) target = $region25
      $region22: #{tpu_custom_call.1} parent=18 // loop_body
        %s44 = smul.u32 0, 16
        %s45 = sadd.s32 %s44, %s39
        %s46 = sld [smem:[#allocation3 + %s45]]
        %p47 = scmp.gt.s32.totalorder %s46, 0
        %s48 = scalar_select %p47, %s46, 0
        %p49 = scmp.lt.s32.totalorder %s48, 9
        %s50 = scalar_select %p49, %s48, 9
        %s51 = scalar_lea.vmem [#allocation4], %s50
        %v52 = vld [vmem:[%s51] sm:$0x1]
        %s53 = scalar_lea.vmem [#allocation8], %s39
        %vm54 = vcmask 253952
        %55 = vst.msk [vmem:[%s53] sm:$0x1] %vm54, %v52
      $region23: #{tpu_custom_call.1} parent=18 // loop_footer
        %s43 = sadd.s32 1, %s39
      $region24: #{tpu_custom_call.1} parent=18 // loop_footer_branch
        %38 = sbr.rel target = $region20
      $region25: #{tpu_custom_call.1} parent=18 // loop_exit
        _
      %v56 = vld [vmem:[#allocation8] sm:$0xff]
      %v57 = vld [vmem:[#allocation8 + $0x8] sm:$0xff]
      %v58 = vmul.f32 %v36, %v36
      %v59 = vmul.f32 %v37, %v37
      %vm60 = vcmask 261120
      %v61 = vsel %vm60, %v58, 0.0
      %62 = vadd.xlane.f32.xlu0 %v61
      %v63 = vpop.xlane.xlu0 %62
      %v64 = vsel %vm60, %v59, 0.0
      %65 = vadd.xlane.f32.xlu0 %v64
      %v66 = vpop.xlane.xlu0 %65
      %v67 = vrsqrt.pop %v63
      %v68 = vrsqrt.pop %v66
      %v69 = vmul.f32 %v36, %v67
      %v70 = vmul.f32 %v37, %v68
      %v71 = vsub.f32 %v69, %v56
      %v72 = vsub.f32 %v70, %v57
      %v73 = vmul.f32 %v71, %v71
      %v74 = vmul.f32 %v72, %v72
      %s75 = smul.u32 0, 16
      %v76 = vlaneseq
      %v77 = vshrl.u32 %v76, 7
      %v78 = vadd.s32 %v77, 8
      %v79 = vstv %s75
      %v80 = vadd.s32 %v79, %v77
      %v81 = vadd.s32 %v79, %v78
      %vm82 = vcmp.lt.s32.totalorder %v80, 16
      %vm83 = vcmp.lt.s32.totalorder %v81, 16
      %v84 = vsel %vm82, %v73, 0.0
      %v85 = vsel %vm83, %v74, 0.0
      %v86 = vsel %vm60, %v84, 0.0
      %v87 = vsel %vm60, %v85, 0.0
      %v88 = vadd.f32 %v86, %v87
      %89 = vadd.xlane.f32.xlu0 %v88
      %v90 = vpop.xlane.xlu0 %89
      %v91 = vrot.slane %v90, 4
      %v92 = vadd.f32 %v90, %v91
      %v93 = vrot.slane %v92, 2
      %v94 = vadd.f32 %v92, %v93
      %v95 = vrot.slane %v94, 1
      %v96 = vadd.f32 %v94, %v95
      %s97 = vtos %v96
      %v98 = vstv %s97
      %99 = vst [vmem:[#allocation7] sm:$0x1] %v98
    // Predicated region
    $region26: #{tpu_custom_call.1} parent=1 // pred_check
      _
    $region27: #{tpu_custom_call.1} parent=1 // pred_check_branch
      %101 = sbr.rel (0) target = $region29
    $region28: #{tpu_custom_call.1} parent=1 // pred_region
      %s103 = ssub.s32 16, 16
      %104 = vsyncadd [#allocation6], %s103
      %s106 = sshll.u32 [#allocation7], 4
      %s107 = int_to_ptr.vmem [resolvable:$true] %s106
      %109 = dma.vmem_to_hbm [thread:$0]  %s107, 16, %s4, [#allocation6]
    $region29: #{tpu_custom_call.1} parent=1 // pred_fallthru
      _
    // Predicated region
    $region30: #{tpu_custom_call.1} parent=1 // pred_check
      _
    $region31: #{tpu_custom_call.1} parent=1 // pred_check_branch
      %111 = sbr.rel (0) target = $region33
    $region32: #{tpu_custom_call.1} parent=1 // pred_region
      %112 = dma.done [#allocation6], 16
    $region33: #{tpu_custom_call.1} parent=1 // pred_fallthru
      _
    %113 = vsyncpa [#allocation5], 1
    %114 = vsyncpa [#allocation6], 1

</llo_original>
